<compile_context>
chip_gen: v5e
topology: v5e:2x2
jax: 0.10.0
libtpu: 0.0.40
codegen_flags: <defaults>
</compile_context>

<pallas_src>
import numpy as np
import jax
import jax.numpy as jnp
from jax.experimental import pallas as pl
from jax.experimental.pallas import tpu as pltpu


# ----------------------------------------------------------------------------
# Pallas kernel
# ----------------------------------------------------------------------------
def _dfl_kernel(x_ref, w_ref, o_ref):
    # x_ref: (1, 4*c1, TA)  logits for one batch element, TA anchors (lanes)
    # w_ref: (c1, 1)        fixed DFL conv weight = arange(c1)
    # o_ref: (1, 4, TA)     expected bin index per box side
    c1 = w_ref.shape[0]
    ta = x_ref.shape[2]

    # (4*c1, TA) -> (4, c1, TA): splits the sublane dim at a tile-aligned
    # boundary (c1 = 16 is a multiple of 8), so this is a layout-preserving
    # view, not a relayout copy. Matches torch's view(b, 4, c1, a).
    x = x_ref[0].reshape(4, c1, ta).astype(jnp.float32)

    m = jnp.max(x, axis=1, keepdims=True)            # (4, 1, TA)  stable softmax
    e = jnp.exp(x - m)                               # (4, c1, TA) EUP
    den = jnp.sum(e, axis=1)                         # (4, TA)
    w = w_ref[...].astype(jnp.float32)[None, :, :]   # (1, c1, 1)  broadcast
    num = jnp.sum(e * w, axis=1)                     # (4, TA)

    o_ref[0] = (num / den).astype(o_ref.dtype)       # lane-dense (4, TA) store


# ----------------------------------------------------------------------------
# Wrapper
# ----------------------------------------------------------------------------
def dfl_forward(x, w):
    """x: (B, 4*c1, A) logits; w: (c1,) DFL conv weight -> (B, 4, A)."""
    B, C, A = x.shape
    c1 = w.shape[0]
    assert C == 4 * c1, f"channel dim {C} must equal 4*c1={4 * c1}"

    # Largest lane-dense anchor tile that divides A; fall back to the full
    # extent (allowed: block dim == full array dim) for odd sizes.
    ta = A
    for cand in (2048, 1024, 512, 256, 128):
        if A % cand == 0:
            ta = cand
            break

    grid = (B, A // ta)
    return pl.pallas_call(
        _dfl_kernel,
        out_shape=jax.ShapeDtypeStruct((B, 4, A), x.dtype),
        grid=grid,
        in_specs=[
            pl.BlockSpec((1, C, ta), lambda b, a: (b, 0, a)),
            pl.BlockSpec((c1, 1), lambda b, a: (0, 0)),
        ],
        out_specs=pl.BlockSpec((1, 4, ta), lambda b, a: (b, 0, a)),
        compiler_params=pltpu.CompilerParams(
            dimension_semantics=("parallel", "parallel")),
    )(x, w.reshape(c1, 1))


# ----------------------------------------------------------------------------
# Plain-JAX reference (mirrors the PyTorch forward) for validation
# ----------------------------------------------------------------------------
def dfl_reference(x, w):
    b, c, a = x.shape
    c1 = w.shape[0]
    xr = x.reshape(b, 4, c1, a)                 # view(b, 4, c1, a)
    xt = jnp.transpose(xr, (0, 2, 1, 3))        # transpose(2, 1) -> (b, c1, 4, a)
    p = jax.nn.softmax(xt, axis=1)              # softmax over the c1 bins
    return jnp.einsum("bcga,c->bga", p, w)      # 1x1 conv with weight arange(c1)


# ----------------------------------------------------------------------------
if __name__ == "__main__":
    c1 = 16                      # DFL default reg_max bins
    B, A = 2, 256                # small test: 2 images, 256 anchors
    key = jax.random.PRNGKey(0)
    x = jax.random.normal(key, (B, 4 * c1, A), jnp.float32)
    w = jnp.arange(c1, dtype=jnp.float32)       # fixed, non-trainable conv weight

    fwd = jax.jit(dfl_forward)
    out = jax.block_until_ready(fwd(x, w))

    ref = jax.block_until_ready(dfl_reference(x, w))
    np.testing.assert_allclose(np.asarray(out), np.asarray(ref),
                               rtol=1e-4, atol=1e-4)
    assert out.shape == (B, 4, A)
    print("KERNEL_OK")
</pallas_src>

<mosaic_0001>
module attributes {stable_mosaic.version = 11 : i64} {
  func.func @_dfl_kernel(%arg0: i32, %arg1: i32, %arg2: memref<1x64x256xf32, #tpu.memory_space<vmem>>, %arg3: memref<16x1xf32, #tpu.memory_space<vmem>>, %arg4: memref<1x4x256xf32, #tpu.memory_space<vmem>>) attributes {dimension_semantics = [#tpu.dimension_semantics<parallel>, #tpu.dimension_semantics<parallel>], iteration_bounds = array<i64: 2, 1>, scalar_prefetch = 0 : i64, scratch_operands = 0 : i64, tpu.core_type = #tpu.core_type<tc>, window_params = [{transform_indices = @transform_0, window_bounds = array<i64: 1, 64, 256>}, {pipeline_mode = #tpu.pipeline_mode<synchronous>, transform_indices = @transform_1, window_bounds = array<i64: 16, 1>}, {transform_indices = @transform_2, window_bounds = array<i64: 1, 4, 256>}]} {
    %c0 = arith.constant 0 : index
    %c0_0 = arith.constant 0 : index
    %c0_1 = arith.constant 0 : index
    %0 = vector.load %arg2[%c0, %c0_0, %c0_1] : memref<1x64x256xf32, #tpu.memory_space<vmem>>, vector<1x64x256xf32>
    %1 = vector.shape_cast %0 : vector<1x64x256xf32> to vector<64x256xf32>
    %2 = vector.shape_cast %1 : vector<64x256xf32> to vector<4x16x256xf32>
    %cst = arith.constant dense<0xFF800000> : vector<4x256xf32>
    %3 = vector.multi_reduction <maximumf>, %2, %cst [1] : vector<4x16x256xf32> to vector<4x256xf32>
    %4 = vector.shape_cast %3 : vector<4x256xf32> to vector<4x1x256xf32>
    %5 = vector.broadcast %4 : vector<4x1x256xf32> to vector<4x16x256xf32>
    %6 = arith.subf %2, %5 : vector<4x16x256xf32>
    %7 = math.exp %6 : vector<4x16x256xf32>
    %cst_2 = arith.constant dense<0.000000e+00> : vector<4x256xf32>
    %8 = vector.multi_reduction <add>, %7, %cst_2 [1] : vector<4x16x256xf32> to vector<4x256xf32>
    %c0_3 = arith.constant 0 : index
    %c0_4 = arith.constant 0 : index
    %9 = vector.load %arg3[%c0_3, %c0_4] : memref<16x1xf32, #tpu.memory_space<vmem>>, vector<16x1xf32>
    %10 = vector.shape_cast %9 : vector<16x1xf32> to vector<1x16x1xf32>
    %11 = vector.broadcast %10 : vector<1x16x1xf32> to vector<4x16x256xf32>
    %12 = arith.mulf %7, %11 : vector<4x16x256xf32>
    %cst_5 = arith.constant dense<0.000000e+00> : vector<4x256xf32>
    %13 = vector.multi_reduction <add>, %12, %cst_5 [1] : vector<4x16x256xf32> to vector<4x256xf32>
    %14 = arith.divf %13, %8 : vector<4x256xf32>
    %c0_6 = arith.constant 0 : index
    %c0_7 = arith.constant 0 : index
    %c0_8 = arith.constant 0 : index
    %15 = vector.load %arg4[%c0_6, %c0_7, %c0_8] : memref<1x4x256xf32, #tpu.memory_space<vmem>>, vector<1x4x256xf32>
    %16 = vector.shape_cast %15 : vector<1x4x256xf32> to vector<4x256xf32>
    %17 = vector.shape_cast %14 : vector<4x256xf32> to vector<1x4x256xf32>
    tpu.vector_store %arg4[%c0_6, %c0_7, %c0_8], %17 {strides = array<i32>} : memref<1x4x256xf32, #tpu.memory_space<vmem>>, vector<1x4x256xf32>,
    return
  }
  func.func @transform_0(%arg0: i32, %arg1: i32) -> (i32, i32, i32) {
    %c0_i32 = arith.constant 0 : i32
    %c0_i32_0 = arith.constant 0 : i32
    return %arg0, %c0_i32, %arg1 : i32, i32, i32
  }
  func.func @transform_1(%arg0: i32, %arg1: i32) -> (i32, i32) {
    %c0_i32 = arith.constant 0 : i32
    %c0_i32_0 = arith.constant 0 : i32
    %c0_i32_1 = arith.constant 0 : i32
    return %c0_i32, %c0_i32_0 : i32, i32
  }
  func.func @transform_2(%arg0: i32, %arg1: i32) -> (i32, i32, i32) {
    %c0_i32 = arith.constant 0 : i32
    %c0_i32_0 = arith.constant 0 : i32
    return %arg0, %c0_i32, %arg1 : i32, i32, i32
  }
}

</mosaic_0001>

<llo_original>
// kernel: dfl_forward.1
$region0: #{dfl_forward.1}
  #allocation0 [shape = 'u32[]', space=smem, size = 0x4, offset = 0x4, fixed_abs, tag = 'smem constant byte address 0x4 - core index']
  #allocation1 [shape = 'u32[72,128]{1,0:T(1,128)}', space=vmem, size = 0x9000, scoped, tag = 'internal scratch']
  %s0 = inlined_call_operand.hbm [shape: f32[2,64,256], index: 0, kind: input, shape index: {}]
  %s1 = inlined_call_operand.vmem [shape: f32[16,1], index: 1, kind: input, shape index: {}]
  %s2 = inlined_call_operand.hbm [shape: f32[2,4,256], index: 2, kind: output, shape index: {}]
  %s3 = sld [smem:[#allocation0]]
  $region45: #{dfl_forward.1} parent=0
    _
  %s5 = ssub.s32 1, %s3
  %s6 = scalar_select 0, %s5, %s3
  $region1: #{dfl_forward.1} parent=0
    #allocation2 [shape = 'u8[131072]{0}', space=vmem, size = 0x20000, scoped, tag = 'input window, operand 0']
    #allocation3 [shape = 's32[2]{0}', space=sflag, size = 0x8, scoped, tag = 'scoped memory for dfl_forward.1']
    #allocation4 [shape = 's32[2]{0}', space=sflag, size = 0x8, scoped, tag = 'scoped memory for dfl_forward.1']
    #allocation5 [shape = 'u8[8192]{0}', space=vmem, size = 0x2000, scoped, tag = 'output window, operand 0']
    %7 = vsyncpa [#allocation3], 0
    %s8 = scalar_lea.sflag [#allocation3], 1
    %9 = vsyncpa %s8, 0
    %10 = vsyncpa [#allocation4], 0
    %s11 = scalar_lea.sflag [#allocation4], 1
    %12 = vsyncpa %s11, 0
    loop: start=0, step=1, limit=4
    $region2: #{dfl_forward.1} parent=1 // loop_pre_header
      _
    $region3: #{dfl_forward.1} parent=1 // loop_header
      %s14 = sphi 0, %s18
      %p15 = scmp.ge.s32.totalorder %s14, 4
      %s21 = sphi 0, %s33
      %s22 = sphi 0, %s29
      %s23 = sphi 0, %s21
      %s24 = sphi 0, %s22
      %s25 = sphi 0, %s23
      %s26 = sphi 0, %s24
      %s38 = sphi 0, %s40
      %s41 = sphi 0, %s38
      %s42 = sphi 0, %s41
      %s58 = sphi 0, %s42
      %s62 = sphi 0, %s62
      %s64 = sphi 0, %s62
      %s65 = sphi 0, %s64
      %s79 = sphi 0, %s65
      %s87 = sphi 0, %s89
      %s90 = sphi 0, %s87
      %s91 = sphi 0, %s90
      %s107 = sphi 0, %s91
    $region4: #{dfl_forward.1} parent=1 // loop_header_branch
      %17 = sbr.rel (%p15) target = $region8
    $region5: #{dfl_forward.1} parent=1 // loop_body
      %s19 = ssub.s32 %s14, 1
      %s20 = ssub.s32 %s14, 2
      %s27 = sadd.s32 1, %s22
      %p28 = scmp.ge.s32.totalorder %s27, 1
      %s29 = scalar_select %p28, 0, %s27
      %s30 = sadd.s32 1, %s21
      %s31 = scalar_select %p28, %s30, %s21
      %p32 = scmp.ge.s32.totalorder %s31, 2
      %s33 = scalar_select %p32, 0, %s31
      %s34 = ssub.s32 %s21, %s33
      %s35 = ssub.s32 %s22, %s29
      %s36 = sor.u32 %s34, %s35
      %p37 = scmp.eq.s32.totalorder %s36, 0
      %s39 = sadd.s32 %s38, 1
      %s40 = scalar_select %p37, %s38, %s39
      %p43 = pneg %p37
      %p44 = scmp.eq.s32.totalorder %s14, 1
      %p45 = por %p43, %p44
      %p46 = scmp.ne.s32.totalorder %s38, %s41
      %p47 = scmp.eq.s32.totalorder %s14, 0
      %p48 = por %p46, %p47
      %p49 = scmp.ne.s32.totalorder %s38, %s41
      %p50 = scmp.eq.s32.totalorder %s19, 1
      %p51 = por %p49, %p50
      %p52 = scmp.ne.s32.totalorder %s41, %s42
      %p53 = scmp.eq.s32.totalorder %s19, 0
      %p54 = por %p52, %p53
      %p55 = scmp.ne.s32.totalorder %s41, %s42
      %p56 = scmp.eq.s32.totalorder %s20, 1
      %p57 = por %p55, %p56
      %p59 = scmp.ne.s32.totalorder %s42, %s58
      %p60 = scmp.eq.s32.totalorder %s20, 0
      %p61 = por %p59, %p60
      %s63 = sadd.s32 %s62, 1
      %p66 = scmp.eq.s32.totalorder %s14, 1
      %p67 = scmp.ne.s32.totalorder %s62, %s64
      %p68 = scmp.eq.s32.totalorder %s14, 0
      %p69 = por %p67, %p68
      %p70 = scmp.ne.s32.totalorder %s62, %s64
      %p71 = scmp.eq.s32.totalorder %s19, 1
      %p72 = por %p70, %p71
      %p73 = scmp.ne.s32.totalorder %s64, %s65
      %p74 = scmp.eq.s32.totalorder %s19, 0
      %p75 = por %p73, %p74
      %p76 = scmp.ne.s32.totalorder %s64, %s65
      %p77 = scmp.eq.s32.totalorder %s20, 1
      %p78 = por %p76, %p77
      %p80 = scmp.ne.s32.totalorder %s65, %s79
      %p81 = scmp.eq.s32.totalorder %s20, 0
      %p82 = por %p80, %p81
      %s83 = ssub.s32 %s21, %s33
      %s84 = ssub.s32 %s22, %s29
      %s85 = sor.u32 %s83, %s84
      %p86 = scmp.eq.s32.totalorder %s85, 0
      %s88 = sadd.s32 %s87, 1
      %s89 = scalar_select %p86, %s87, %s88
      %p92 = pneg %p86
      %p93 = scmp.eq.s32.totalorder %s14, 1
      %p94 = por %p92, %p93
      %p95 = scmp.ne.s32.totalorder %s87, %s90
      %p96 = scmp.eq.s32.totalorder %s14, 0
      %p97 = por %p95, %p96
      %p98 = scmp.ne.s32.totalorder %s87, %s90
      %p99 = scmp.eq.s32.totalorder %s19, 1
      %p100 = por %p98, %p99
      %p101 = scmp.ne.s32.totalorder %s90, %s91
      %p102 = scmp.eq.s32.totalorder %s19, 0
      %p103 = por %p101, %p102
      %p104 = scmp.ne.s32.totalorder %s90, %s91
      %p105 = scmp.eq.s32.totalorder %s20, 1
      %p106 = por %p104, %p105
      %p108 = scmp.ne.s32.totalorder %s91, %s107
      %p109 = scmp.eq.s32.totalorder %s20, 0
      %p110 = por %p108, %p109
      %p111 = scmp.le.s32.totalorder 1, %s14
      %p112 = scmp.lt.s32.totalorder %s14, 3
      %p113 = pnand %p111, %p112
      %p114 = pneg %p113
      // Predicated region
      $region9: #{dfl_forward.1} parent=5 // pred_check
        _
      $region10: #{dfl_forward.1} parent=5 // pred_check_branch
        %116 = sbr.rel (%p113) target = $region12
      $region11: #{dfl_forward.1} parent=5 // pred_region
        %s117 = ssub.s32 %s14, 1
        // Predicated region
        $region13: #{dfl_forward.1} parent=11 // pred_check
          %p118 = pneg %p75
        $region14: #{dfl_forward.1} parent=11 // pred_check_branch
          %120 = sbr.rel (%p118) target = $region16
        $region15: #{dfl_forward.1} parent=11 // pred_region
          _
        $region16: #{dfl_forward.1} parent=11 // pred_fallthru
          _
      $region12: #{dfl_forward.1} parent=5 // pred_fallthru
        _
      %p121 = scmp.lt.s32.totalorder %s14, 2
      // Predicated region
      $region17: #{dfl_forward.1} parent=5 // pred_check
        %p122 = pneg %p121
      $region18: #{dfl_forward.1} parent=5 // pred_check_branch
        %124 = sbr.rel (%p122) target = $region20
      $region19: #{dfl_forward.1} parent=5 // pred_region
        // Predicated region
        $region21: #{dfl_forward.1} parent=19 // pred_check
          %p125 = pneg %p48
        $region22: #{dfl_forward.1} parent=19 // pred_check_branch
          %127 = sbr.rel (%p125) target = $region24
        $region23: #{dfl_forward.1} parent=19 // pred_region
          %s128 = sand.u32 %s38, 1
          %s129 = scalar_lea.sflag [#allocation3], %s128
          %s130 = sand.u32 %s38, 1
          %s131 = smul.addr %s130, 128
          %s132 = scalar_lea.vmem [#allocation2], %s131
          %s133 = smul.u32 2, %s22
          %135 = vsyncadd %s129, 0
          %s136 = smul.addr %s21, 16
          %s137 = sadd.s32 %s133, %s136
          %s138 = smul.addr %s137, 8
          %s139 = scalar_lea.hbm %s0, %s138
          %s140 = sshll.u32 %s139, 4
          %s141 = int_to_ptr.hbm [resolvable:$true] %s140
          %s142 = sshll.u32 %s132, 4
          %s143 = int_to_ptr.vmem [resolvable:$true] %s142
          %148 = dma.hbm_to_vmem [thread:$0]  %s141, 2048, %s143, %s129, 256, 256, 16
        $region24: #{dfl_forward.1} parent=19 // pred_fallthru
          _
      $region20: #{dfl_forward.1} parent=5 // pred_fallthru
        _
      %p149 = scmp.le.s32.totalorder 1, %s14
      %p150 = scmp.lt.s32.totalorder %s14, 3
      %p151 = pnand %p149, %p150
      %p152 = pneg %p151
      // Predicated region
      $region25: #{dfl_forward.1} parent=5 // pred_check
        _
      $region26: #{dfl_forward.1} parent=5 // pred_check_branch
        %154 = sbr.rel (%p151) target = $region28
      $region27: #{dfl_forward.1} parent=5 // pred_region
        %s155 = ssub.s32 %s14, 1
        %s156 = sand.u32 %s41, 1
        %s157 = scalar_lea.sflag [#allocation3], %s156
        %s158 = sand.u32 %s41, 1
        %s159 = smul.addr %s158, 128
        %s160 = scalar_lea.vmem [#allocation2], %s159
        // Predicated region
        $region29: #{dfl_forward.1} parent=27 // pred_check
          %p161 = pneg %p54
        $region30: #{dfl_forward.1} parent=27 // pred_check_branch
          %163 = sbr.rel (%p161) target = $region32
        $region31: #{dfl_forward.1} parent=27 // pred_region
          %165 = dma.done %s157, 2048
        $region32: #{dfl_forward.1} parent=27 // pred_fallthru
          _
        %s166 = sand.u32 %s41, 1
        %s167 = scalar_lea.sflag [#allocation3], %s166
        %s168 = sand.u32 %s41, 1
        %s169 = smul.addr %s168, 128
        %s170 = scalar_lea.vmem [#allocation2], %s169
        %p171 = pneg %p54
        %p172 = pneg %p51
        %p173 = pneg %p75
        %p174 = pneg %p72
        %p175 = pneg %p103
        %p176 = pneg %p100
        %s177 = sand.u32 %s90, 1
        %s178 = scalar_lea.sflag [#allocation4], %s177
        %s179 = sand.u32 %s90, 1
        %s180 = smul.addr %s179, 8
        %s181 = scalar_lea.vmem [#allocation5], %s180
        %s182 = smul.u32 2, %s24
        %s183 = smul.u32 2, %s24
        %v184 = vld [vmem:[%s160] sm:$0xff]
        %v185 = vld [vmem:[%s160 + $0x8] sm:$0xff]
        %v186 = vld [vmem:[%s160 + $0x10] sm:$0xff]
        %v187 = vld [vmem:[%s160 + $0x18] sm:$0xff]
        %v188 = vld [vmem:[%s160 + $0x20] sm:$0xff]
        %v189 = vld [vmem:[%s160 + $0x28] sm:$0xff]
        %v190 = vld [vmem:[%s160 + $0x30] sm:$0xff]
        %v191 = vld [vmem:[%s160 + $0x38] sm:$0xff]
        %v192 = vld [vmem:[%s160 + $0x40] sm:$0xff]
        %v193 = vld [vmem:[%s160 + $0x48] sm:$0xff]
        %v194 = vld [vmem:[%s160 + $0x50] sm:$0xff]
        %v195 = vld [vmem:[%s160 + $0x58] sm:$0xff]
        %v196 = vld [vmem:[%s160 + $0x60] sm:$0xff]
        %v197 = vld [vmem:[%s160 + $0x68] sm:$0xff]
        %v198 = vld [vmem:[%s160 + $0x70] sm:$0xff]
        %v199 = vld [vmem:[%s160 + $0x78] sm:$0xff]
        %v200 = vmax.f32 %v184, %v186
        %v201 = vrot.slane %v200, 4
        %v202 = vmax.f32 %v200, %v201
        %v203 = vrot.slane %v202, 2
        %v204 = vmax.f32 %v202, %v203
        %v205 = vrot.slane %v204, 1
        %v206 = vmax.f32 %v204, %v205
        %v207 = vmax.f32 %v185, %v187
        %v208 = vrot.slane %v207, 4
        %v209 = vmax.f32 %v207, %v208
        %v210 = vrot.slane %v209, 2
        %v211 = vmax.f32 %v209, %v210
        %v212 = vrot.slane %v211, 1
        %v213 = vmax.f32 %v211, %v212
        %v214 = vmax.f32 %v188, %v190
        %v215 = vrot.slane %v214, 4
        %v216 = vmax.f32 %v214, %v215
        %v217 = vrot.slane %v216, 2
        %v218 = vmax.f32 %v216, %v217
        %v219 = vrot.slane %v218, 1
        %v220 = vmax.f32 %v218, %v219
        %v221 = vmax.f32 %v189, %v191
        %v222 = vrot.slane %v221, 4
        %v223 = vmax.f32 %v221, %v222
        %v224 = vrot.slane %v223, 2
        %v225 = vmax.f32 %v223, %v224
        %v226 = vrot.slane %v225, 1
        %v227 = vmax.f32 %v225, %v226
        %v228 = vmax.f32 %v192, %v194
        %v229 = vrot.slane %v228, 4
        %v230 = vmax.f32 %v228, %v229
        %v231 = vrot.slane %v230, 2
        %v232 = vmax.f32 %v230, %v231
        %v233 = vrot.slane %v232, 1
        %v234 = vmax.f32 %v232, %v233
        %v235 = vmax.f32 %v193, %v195
        %v236 = vrot.slane %v235, 4
        %v237 = vmax.f32 %v235, %v236
        %v238 = vrot.slane %v237, 2
        %v239 = vmax.f32 %v237, %v238
        %v240 = vrot.slane %v239, 1
        %v241 = vmax.f32 %v239, %v240
        %v242 = vmax.f32 %v196, %v198
        %v243 = vrot.slane %v242, 4
        %v244 = vmax.f32 %v242, %v243
        %v245 = vrot.slane %v244, 2
        %v246 = vmax.f32 %v244, %v245
        %v247 = vrot.slane %v246, 1
        %v248 = vmax.f32 %v246, %v247
        %v249 = vmax.f32 %v197, %v199
        %v250 = vrot.slane %v249, 4
        %v251 = vmax.f32 %v249, %v250
        %v252 = vrot.slane %v251, 2
        %v253 = vmax.f32 %v251, %v252
        %v254 = vrot.slane %v253, 1
        %v255 = vmax.f32 %v253, %v254
        %v256 = vsub.f32 %v184, %v206
        %v257 = vsub.f32 %v185, %v213
        %v258 = vsub.f32 %v186, %v206
        %v259 = vsub.f32 %v187, %v213
        %v260 = vsub.f32 %v188, %v220
        %v261 = vsub.f32 %v189, %v227
        %v262 = vsub.f32 %v190, %v220
        %v263 = vsub.f32 %v191, %v227
        %v264 = vsub.f32 %v192, %v234
        %v265 = vsub.f32 %v193, %v241
        %v266 = vsub.f32 %v194, %v234
        %v267 = vsub.f32 %v195, %v241
        %v268 = vsub.f32 %v196, %v248
        %v269 = vsub.f32 %v197, %v255
        %v270 = vsub.f32 %v198, %v248
        %v271 = vsub.f32 %v199, %v255
        %v272 = vmul.f32 %v256, 1.442695
        %v273 = vpow.pop %v272
        %v274 = vmul.f32 %v257, 1.442695
        %v275 = vpow.pop %v274
        %v276 = vmul.f32 %v258, 1.442695
        %v277 = vpow.pop %v276
        %v278 = vmul.f32 %v259, 1.442695
        %v279 = vpow.pop %v278
        %v280 = vmul.f32 %v260, 1.442695
        %v281 = vpow.pop %v280
        %v282 = vmul.f32 %v261, 1.442695
        %v283 = vpow.pop %v282
        %v284 = vmul.f32 %v262, 1.442695
        %v285 = vpow.pop %v284
        %v286 = vmul.f32 %v263, 1.442695
        %v287 = vpow.pop %v286
        %v288 = vmul.f32 %v264, 1.442695
        %v289 = vpow.pop %v288
        %v290 = vmul.f32 %v265, 1.442695
        %v291 = vpow.pop %v290
        %v292 = vmul.f32 %v266, 1.442695
        %v293 = vpow.pop %v292
        %v294 = vmul.f32 %v267, 1.442695
        %v295 = vpow.pop %v294
        %v296 = vmul.f32 %v268, 1.442695
        %v297 = vpow.pop %v296
        %v298 = vmul.f32 %v269, 1.442695
        %v299 = vpow.pop %v298
        %v300 = vmul.f32 %v270, 1.442695
        %v301 = vpow.pop %v300
        %v302 = vmul.f32 %v271, 1.442695
        %v303 = vpow.pop %v302
        %v304 = vadd.f32 %v273, %v277
        %v305 = vrot.slane %v304, 4
        %v306 = vadd.f32 %v304, %v305
        %v307 = vrot.slane %v306, 2
        %v308 = vadd.f32 %v306, %v307
        %v309 = vrot.slane %v308, 1
        %v310 = vadd.f32 %v308, %v309
        %v311 = vadd.f32 %v275, %v279
        %v312 = vrot.slane %v311, 4
        %v313 = vadd.f32 %v311, %v312
        %v314 = vrot.slane %v313, 2
        %v315 = vadd.f32 %v313, %v314
        %v316 = vrot.slane %v315, 1
        %v317 = vadd.f32 %v315, %v316
        %v318 = vadd.f32 %v281, %v285
        %v319 = vrot.slane %v318, 4
        %v320 = vadd.f32 %v318, %v319
        %v321 = vrot.slane %v320, 2
        %v322 = vadd.f32 %v320, %v321
        %v323 = vrot.slane %v322, 1
        %v324 = vadd.f32 %v322, %v323
        %v325 = vadd.f32 %v283, %v287
        %v326 = vrot.slane %v325, 4
        %v327 = vadd.f32 %v325, %v326
        %v328 = vrot.slane %v327, 2
        %v329 = vadd.f32 %v327, %v328
        %v330 = vrot.slane %v329, 1
        %v331 = vadd.f32 %v329, %v330
        %v332 = vadd.f32 %v289, %v293
        %v333 = vrot.slane %v332, 4
        %v334 = vadd.f32 %v332, %v333
        %v335 = vrot.slane %v334, 2
        %v336 = vadd.f32 %v334, %v335
        %v337 = vrot.slane %v336, 1
        %v338 = vadd.f32 %v336, %v337
        %v339 = vadd.f32 %v291, %v295
        %v340 = vrot.slane %v339, 4
        %v341 = vadd.f32 %v339, %v340
        %v342 = vrot.slane %v341, 2
        %v343 = vadd.f32 %v341, %v342
        %v344 = vrot.slane %v343, 1
        %v345 = vadd.f32 %v343, %v344
        %v346 = vadd.f32 %v297, %v301
        %v347 = vrot.slane %v346, 4
        %v348 = vadd.f32 %v346, %v347
        %v349 = vrot.slane %v348, 2
        %v350 = vadd.f32 %v348, %v349
        %v351 = vrot.slane %v350, 1
        %v352 = vadd.f32 %v350, %v351
        %v353 = vadd.f32 %v299, %v303
        %v354 = vrot.slane %v353, 4
        %v355 = vadd.f32 %v353, %v354
        %v356 = vrot.slane %v355, 2
        %v357 = vadd.f32 %v355, %v356
        %v358 = vrot.slane %v357, 1
        %v359 = vadd.f32 %v357, %v358
        %v360 = vld [vmem:[%s1] sm:$0xff]
        %v361 = vld [vmem:[%s1 + $0x8] sm:$0xff]
        %363 = vset.pattern.permute.xlu0 0
        %364 = vperm.xlu0 %363, %v360
        %v365 = vpop.permute.xlu0 %364
        %368 = vset.pattern.permute.xlu0 0
        %369 = vperm.xlu0 %368, %v361
        %v370 = vpop.permute.xlu0 %369
        %v372 = vmul.f32 %v273, %v365
        %v373 = vmul.f32 %v275, %v365
        %v374 = vmul.f32 %v277, %v370
        %v375 = vmul.f32 %v279, %v370
        %v376 = vmul.f32 %v281, %v365
        %v377 = vmul.f32 %v283, %v365
        %v378 = vmul.f32 %v285, %v370
        %v379 = vmul.f32 %v287, %v370
        %v380 = vmul.f32 %v289, %v365
        %v381 = vmul.f32 %v291, %v365
        %v382 = vmul.f32 %v293, %v370
        %v383 = vmul.f32 %v295, %v370
        %v384 = vmul.f32 %v297, %v365
        %v385 = vmul.f32 %v299, %v365
        %v386 = vmul.f32 %v301, %v370
        %v387 = vmul.f32 %v303, %v370
        %v388 = vadd.f32 %v372, %v374
        %v389 = vrot.slane %v388, 4
        %v390 = vadd.f32 %v388, %v389
        %v391 = vrot.slane %v390, 2
        %v392 = vadd.f32 %v390, %v391
        %v393 = vrot.slane %v392, 1
        %v394 = vadd.f32 %v392, %v393
        %v395 = vadd.f32 %v373, %v375
        %v396 = vrot.slane %v395, 4
        %v397 = vadd.f32 %v395, %v396
        %v398 = vrot.slane %v397, 2
        %v399 = vadd.f32 %v397, %v398
        %v400 = vrot.slane %v399, 1
        %v401 = vadd.f32 %v399, %v400
        %v402 = vadd.f32 %v376, %v378
        %v403 = vrot.slane %v402, 4
        %v404 = vadd.f32 %v402, %v403
        %v405 = vrot.slane %v404, 2
        %v406 = vadd.f32 %v404, %v405
        %v407 = vrot.slane %v406, 1
        %v408 = vadd.f32 %v406, %v407
        %v409 = vadd.f32 %v377, %v379
        %v410 = vrot.slane %v409, 4
        %v411 = vadd.f32 %v409, %v410
        %v412 = vrot.slane %v411, 2
        %v413 = vadd.f32 %v411, %v412
        %v414 = vrot.slane %v413, 1
        %v415 = vadd.f32 %v413, %v414
        %v416 = vadd.f32 %v380, %v382
        %v417 = vrot.slane %v416, 4
        %v418 = vadd.f32 %v416, %v417
        %v419 = vrot.slane %v418, 2
        %v420 = vadd.f32 %v418, %v419
        %v421 = vrot.slane %v420, 1
        %v422 = vadd.f32 %v420, %v421
        %v423 = vadd.f32 %v381, %v383
        %v424 = vrot.slane %v423, 4
        %v425 = vadd.f32 %v423, %v424
        %v426 = vrot.slane %v425, 2
        %v427 = vadd.f32 %v425, %v426
        %v428 = vrot.slane %v427, 1
        %v429 = vadd.f32 %v427, %v428
        %v430 = vadd.f32 %v384, %v386
        %v431 = vrot.slane %v430, 4
        %v432 = vadd.f32 %v430, %v431
        %v433 = vrot.slane %v432, 2
        %v434 = vadd.f32 %v432, %v433
        %v435 = vrot.slane %v434, 1
        %v436 = vadd.f32 %v434, %v435
        %v437 = vadd.f32 %v385, %v387
        %v438 = vrot.slane %v437, 4
        %v439 = vadd.f32 %v437, %v438
        %v440 = vrot.slane %v439, 2
        %v441 = vadd.f32 %v439, %v440
        %v442 = vrot.slane %v441, 1
        %v443 = vadd.f32 %v441, %v442
        %v444 = vrcp.pop %v310
        %v445 = vmul.f32 %v310, %v444
        %v446 = vsub.f32 1.0, %v445
        %v447 = vmul.f32 %v444, %v446
        %v448 = vadd.f32 %v444, %v447
        %vm449 = vweird.f32 %v310
        %vm450 = vweird.f32 %v444
        %vm451 = vmor %vm449, %vm450
        %v452 = vsel %vm451, %v444, %v448
        %v453 = vand.u32 2147483647, %v310
        %vm454 = vcmp.eq.f32.partialorder %v453, 8.507059e+37
        %v455 = vand.u32 %v310, 2147483648
        %v456 = vor.u32 1.1754944e-38, %v455
        %v457 = vsel %vm454, %v456, %v452
        %v458 = vmul.f32 %v394, %v457
        %v459 = vrcp.pop %v317
        %v460 = vmul.f32 %v317, %v459
        %v461 = vsub.f32 1.0, %v460
        %v462 = vmul.f32 %v459, %v461
        %v463 = vadd.f32 %v459, %v462
        %vm464 = vweird.f32 %v317
        %vm465 = vweird.f32 %v459
        %vm466 = vmor %vm464, %vm465
        %v467 = vsel %vm466, %v459, %v463
        %v468 = vand.u32 2147483647, %v317
        %vm469 = vcmp.eq.f32.partialorder %v468, 8.507059e+37
        %v470 = vand.u32 %v317, 2147483648
        %v471 = vor.u32 1.1754944e-38, %v470
        %v472 = vsel %vm469, %v471, %v467
        %v473 = vmul.f32 %v401, %v472
        %v474 = vrcp.pop %v324
        %v475 = vmul.f32 %v324, %v474
        %v476 = vsub.f32 1.0, %v475
        %v477 = vmul.f32 %v474, %v476
        %v478 = vadd.f32 %v474, %v477
        %vm479 = vweird.f32 %v324
        %vm480 = vweird.f32 %v474
        %vm481 = vmor %vm479, %vm480
        %v482 = vsel %vm481, %v474, %v478
        %v483 = vand.u32 2147483647, %v324
        %vm484 = vcmp.eq.f32.partialorder %v483, 8.507059e+37
        %v485 = vand.u32 %v324, 2147483648
        %v486 = vor.u32 1.1754944e-38, %v485
        %v487 = vsel %vm484, %v486, %v482
        %v488 = vmul.f32 %v408, %v487
        %v489 = vrcp.pop %v331
        %v490 = vmul.f32 %v331, %v489
        %v491 = vsub.f32 1.0, %v490
        %v492 = vmul.f32 %v489, %v491
        %v493 = vadd.f32 %v489, %v492
        %vm494 = vweird.f32 %v331
        %vm495 = vweird.f32 %v489
        %vm496 = vmor %vm494, %vm495
        %v497 = vsel %vm496, %v489, %v493
        %v498 = vand.u32 2147483647, %v331
        %vm499 = vcmp.eq.f32.partialorder %v498, 8.507059e+37
        %v500 = vand.u32 %v331, 2147483648
        %v501 = vor.u32 1.1754944e-38, %v500
        %v502 = vsel %vm499, %v501, %v497
        %v503 = vmul.f32 %v415, %v502
        %v504 = vrcp.pop %v338
        %v505 = vmul.f32 %v338, %v504
        %v506 = vsub.f32 1.0, %v505
        %v507 = vmul.f32 %v504, %v506
        %v508 = vadd.f32 %v504, %v507
        %vm509 = vweird.f32 %v338
        %vm510 = vweird.f32 %v504
        %vm511 = vmor %vm509, %vm510
        %v512 = vsel %vm511, %v504, %v508
        %v513 = vand.u32 2147483647, %v338
        %vm514 = vcmp.eq.f32.partialorder %v513, 8.507059e+37
        %v515 = vand.u32 %v338, 2147483648
        %v516 = vor.u32 1.1754944e-38, %v515
        %v517 = vsel %vm514, %v516, %v512
        %v518 = vmul.f32 %v422, %v517
        %v519 = vrcp.pop %v345
        %v520 = vmul.f32 %v345, %v519
        %v521 = vsub.f32 1.0, %v520
        %v522 = vmul.f32 %v519, %v521
        %v523 = vadd.f32 %v519, %v522
        %vm524 = vweird.f32 %v345
        %vm525 = vweird.f32 %v519
        %vm526 = vmor %vm524, %vm525
        %v527 = vsel %vm526, %v519, %v523
        %v528 = vand.u32 2147483647, %v345
        %vm529 = vcmp.eq.f32.partialorder %v528, 8.507059e+37
        %v530 = vand.u32 %v345, 2147483648
        %v531 = vor.u32 1.1754944e-38, %v530
        %v532 = vsel %vm529, %v531, %v527
        %v533 = vmul.f32 %v429, %v532
        %v534 = vrcp.pop %v352
        %v535 = vmul.f32 %v352, %v534
        %v536 = vsub.f32 1.0, %v535
        %v537 = vmul.f32 %v534, %v536
        %v538 = vadd.f32 %v534, %v537
        %vm539 = vweird.f32 %v352
        %vm540 = vweird.f32 %v534
        %vm541 = vmor %vm539, %vm540
        %v542 = vsel %vm541, %v534, %v538
        %v543 = vand.u32 2147483647, %v352
        %vm544 = vcmp.eq.f32.partialorder %v543, 8.507059e+37
        %v545 = vand.u32 %v352, 2147483648
        %v546 = vor.u32 1.1754944e-38, %v545
        %v547 = vsel %vm544, %v546, %v542
        %v548 = vmul.f32 %v436, %v547
        %v549 = vrcp.pop %v359
        %v550 = vmul.f32 %v359, %v549
        %v551 = vsub.f32 1.0, %v550
        %v552 = vmul.f32 %v549, %v551
        %v553 = vadd.f32 %v549, %v552
        %vm554 = vweird.f32 %v359
        %vm555 = vweird.f32 %v549
        %vm556 = vmor %vm554, %vm555
        %v557 = vsel %vm556, %v549, %v553
        %v558 = vand.u32 2147483647, %v359
        %vm559 = vcmp.eq.f32.partialorder %v558, 8.507059e+37
        %v560 = vand.u32 %v359, 2147483648
        %v561 = vor.u32 1.1754944e-38, %v560
        %v562 = vsel %vm559, %v561, %v557
        %v563 = vmul.f32 %v443, %v562
        %v572 = vrot.slane %v473, 4
        %v573 = vrot.slane %v503, 4
        %v574 = vrot.slane %v533, 4
        %v575 = vrot.slane %v563, 4
        %vm576 = vcmask 1043456
        %v577 = vsel %vm576, %v458, %v572
        %v578 = vsel %vm576, %v488, %v573
        %v579 = vsel %vm576, %v518, %v574
        %v580 = vsel %vm576, %v548, %v575
        %v581 = vrot.slane %v578, 7
        %vm582 = vcmask 1041409
        %v583 = vsel %vm582, %v581, %v577
        %vm584 = vcmask 1045509
        %v585 = vsel %vm584, %v581, %v583
        %v586 = vrot.slane %v579, 6
        %vm587 = vcmask 1042434
        %v588 = vsel %vm587, %v586, %v585
        %vm589 = vcmask 1046534
        %v590 = vsel %vm589, %v586, %v588
        %v591 = vrot.slane %v580, 5
        %vm592 = vcmask 1043459
        %v593 = vsel %vm592, %v591, %v590
        %vm594 = vcmask 1047559
        %v595 = vsel %vm594, %v591, %v593
        %597 = vst [vmem:[%s181] sm:$0xff] %v595
        %s598 = sand.u32 %s90, 1
        %s599 = scalar_lea.sflag [#allocation4], %s598
        %s600 = sand.u32 %s90, 1
        %s601 = smul.addr %s600, 8
        %s602 = scalar_lea.vmem [#allocation5], %s601
        // Predicated region
        $region33: #{dfl_forward.1} parent=27 // pred_check
          %p603 = pneg %p100
        $region34: #{dfl_forward.1} parent=27 // pred_check_branch
          %605 = sbr.rel (%p603) target = $region36
        $region35: #{dfl_forward.1} parent=27 // pred_region
          %s606 = smul.u32 2, %s24
          %608 = vsyncadd %s599, 0
          %s609 = smul.addr %s23, 2
          %s610 = sadd.s32 %s606, %s609
          %s611 = smul.addr %s610, 4
          %s612 = scalar_lea.hbm %s2, %s611
          %s614 = sshll.u32 %s602, 4
          %s615 = int_to_ptr.vmem [resolvable:$true] %s614
          %s616 = sshll.u32 %s612, 4
          %s617 = int_to_ptr.hbm [resolvable:$true] %s616
          %619 = dma.vmem_to_hbm [thread:$0]  %s615, 128, %s617, %s599
        $region36: #{dfl_forward.1} parent=27 // pred_fallthru
          _
      $region28: #{dfl_forward.1} parent=5 // pred_fallthru
        _
      %p620 = scmp.le.s32.totalorder 2, %s14
      // Predicated region
      $region37: #{dfl_forward.1} parent=5 // pred_check
        %p621 = pneg %p620
      $region38: #{dfl_forward.1} parent=5 // pred_check_branch
        %623 = sbr.rel (%p621) target = $region40
      $region39: #{dfl_forward.1} parent=5 // pred_region
        %s624 = ssub.s32 %s14, 2
        // Predicated region
        $region41: #{dfl_forward.1} parent=39 // pred_check
          %p625 = pneg %p106
        $region42: #{dfl_forward.1} parent=39 // pred_check_branch
          %627 = sbr.rel (%p625) target = $region44
        $region43: #{dfl_forward.1} parent=39 // pred_region
          %s628 = sand.u32 %s91, 1
          %s629 = scalar_lea.sflag [#allocation4], %s628
          %s630 = sand.u32 %s91, 1
          %s631 = smul.addr %s630, 8
          %s632 = scalar_lea.vmem [#allocation5], %s631
          %634 = dma.done %s629, 128
        $region44: #{dfl_forward.1} parent=39 // pred_fallthru
          _
      $region40: #{dfl_forward.1} parent=5 // pred_fallthru
        _
    $region6: #{dfl_forward.1} parent=1 // loop_footer
      %s18 = sadd.s32 1, %s14
    $region7: #{dfl_forward.1} parent=1 // loop_footer_branch
      %13 = sbr.rel target = $region3
    $region8: #{dfl_forward.1} parent=1 // loop_exit
      _
    %635 = vsyncpa [#allocation3], 1
    %s636 = scalar_lea.sflag [#allocation3], 1
    %637 = vsyncpa %s636, 1
    %638 = vsyncpa [#allocation4], 1
    %s639 = scalar_lea.sflag [#allocation4], 1
    %640 = vsyncpa %s639, 1

</llo_original>
